<compile_context>
chip_gen: v5e
topology: v5e:2x2
jax: 0.10.0
libtpu: 0.0.40
codegen_flags: <defaults>
</compile_context>

<pallas_src>
import math

import jax
import jax.numpy as jnp
from jax.experimental import pallas as pl
from jax.experimental.pallas import tpu as pltpu

LEAKY_SLOPE = 0.01
BN_EPS = 1e-5


def _cdiv(a, b):
    return (a + b - 1) // b


def _round_up(x, m):
    return _cdiv(x, m) * m


# ----------------------- Pass A: conv matmul + BN partial stats ---------------
def _conv_stats_kernel(p_ref, w_ref, conv_ref, csum_ref, csq_ref):
    # p_ref:    (TM, K)   im2col patch tile (f32 or bf16)
    # w_ref:    (K, Cout) flattened conv weight
    # conv_ref: (TM, Cout) f32 pre-BN conv output tile
    # csum_ref / csq_ref: (1, 1, Cout) per-tile channel sum / sum-of-squares
    acc = jnp.dot(p_ref[...], w_ref[...], preferred_element_type=jnp.float32)
    conv_ref[...] = acc
    # Per-tile partial statistics; the global reduction over tiles is finished
    # in the wrapper so the M grid axis can stay "parallel" (v7x megacore).
    s = jnp.sum(acc, axis=0, keepdims=True)
    sq = jnp.sum(acc * acc, axis=0, keepdims=True)
    csum_ref[...] = s.reshape(csum_ref.shape)
    csq_ref[...] = sq.reshape(csq_ref.shape)


# ----------------------- Pass B: fused BN affine + LeakyReLU ------------------
def _bn_act_kernel(conv_ref, scale_ref, shift_ref, o_ref):
    # conv_ref: (TR, OW*Cout) lane-dense conv slab
    # scale_ref/shift_ref: (1, OW*Cout) per-channel affine tiled over OW
    y = conv_ref[...] * scale_ref[...] + shift_ref[...]
    o_ref[...] = jnp.where(y > 0, y, LEAKY_SLOPE * y).astype(o_ref.dtype)


# ------------------------------ im2col glue -----------------------------------
def _im2col(x, kh, kw, stride):
    # x: (N, C, H, W) -> patches (N*OH*OW, C*KH*KW), rows ordered (n, oh, ow),
    # columns ordered (c, i, j) to match weight.reshape(Cout, C*KH*KW).
    n, c, h, w = x.shape
    oh = (h - kh) // stride + 1
    ow = (w - kw) // stride + 1
    cols = []
    for i in range(kh):
        for j in range(kw):
            cols.append(x[:, :, i:i + oh * stride:stride, j:j + ow * stride:stride])
    patches = jnp.stack(cols, axis=0)                   # (KH*KW, N, C, OH, OW)
    patches = jnp.transpose(patches, (1, 3, 4, 2, 0))   # (N, OH, OW, C, KH*KW)
    return patches.reshape(n * oh * ow, c * kh * kw), oh, ow


# ------------------------------- forward --------------------------------------
def conv_block4_forward(x, weight, bias, gamma, beta, *, stride=1, padding=0,
                        use_bf16_mxu=False, tile_rows_target=512):
    """ConvBlock4 forward.  x: (N, Cin, H, W) -> (N, Cout, OH, OW)."""
    del bias  # Conv bias is exactly cancelled by the BatchNorm mean subtraction.
    if padding:
        x = jnp.pad(x, ((0, 0), (0, 0), (padding, padding), (padding, padding)))
    n, cin, _, _ = x.shape
    cout, _, kh, kw = weight.shape

    # TODO(synk): the im2col below still materializes a KH*KW-amplified patch
    # matrix in HBM; for large inputs, stream x directly (memory_space=pl.ANY +
    # manual make_async_copy of overlapping row windows) to cut HBM reads ~16x.
    patches, oh, ow = _im2col(x, kh, kw, stride)         # (M, K)
    m, k = patches.shape
    w2 = weight.reshape(cout, cin * kh * kw).T           # (K, Cout)

    in_dtype = jnp.bfloat16 if use_bf16_mxu else jnp.float32
    itemsize = 2 if use_bf16_mxu else 4
    patches = patches.astype(in_dtype)
    w2 = w2.astype(in_dtype)

    # Row tile TM = TR*OW (TR multiple of 8) so the padded conv output reshapes
    # for free into the lane-dense (rows, OW*Cout) layout used by pass B.
    tr = 8 * max(1, _cdiv(tile_rows_target, 8 * ow))
    vmem_budget = 24 * 1024 * 1024   # conservative for v7x (64 MiB physical VMEM)

    def _footprint(tr_):
        tm_ = tr_ * ow
        return (2 * tm_ * k * itemsize      # double-buffered patch tiles
                + 2 * k * cout * itemsize   # weights
                + 2 * tm_ * cout * 4        # double-buffered conv output tiles
                + 8 * cout * 4)             # stats
    while tr > 8 and _footprint(tr) > vmem_budget:
        tr -= 8

    tm = tr * ow
    m_pad = _round_up(m, tm)
    num_tiles = m_pad // tm
    if m_pad > m:
        # Zero rows: with no bias, they contribute exactly 0 to the BN sums.
        patches = jnp.pad(patches, ((0, m_pad - m), (0, 0)))

    cparams = pltpu.CompilerParams(
        dimension_semantics=("parallel",),
        vmem_limit_bytes=32 * 1024 * 1024)

    conv_flat, csum, csq = pl.pallas_call(
        _conv_stats_kernel,
        out_shape=(
            jax.ShapeDtypeStruct((m_pad, cout), jnp.float32),
            jax.ShapeDtypeStruct((num_tiles, 1, cout), jnp.float32),
            jax.ShapeDtypeStruct((num_tiles, 1, cout), jnp.float32),
        ),
        grid=(num_tiles,),
        in_specs=[
            pl.BlockSpec((tm, k), lambda i: (i, 0)),
            pl.BlockSpec((k, cout), lambda i: (0, 0)),
        ],
        out_specs=(
            pl.BlockSpec((tm, cout), lambda i: (i, 0)),
            pl.BlockSpec((1, 1, cout), lambda i: (i, 0, 0)),
            pl.BlockSpec((1, 1, cout), lambda i: (i, 0, 0)),
        ),
        compiler_params=cparams,
    )(patches, w2)

    # ---- finalize BN stats (tiny per-channel math) and fuse the affine -------
    count = jnp.float32(m)                               # true rows, not padded
    ch_sum = jnp.sum(csum.reshape(num_tiles, cout), axis=0)
    ch_sq = jnp.sum(csq.reshape(num_tiles, cout), axis=0)
    mean = ch_sum / count
    var = jnp.maximum(ch_sq / count - mean * mean, 0.0)  # biased (PyTorch train)
    inv_std = jax.lax.rsqrt(var + BN_EPS)
    scale = gamma.astype(jnp.float32) * inv_std
    shift = beta.astype(jnp.float32) - mean * scale

    # ---- pass B: lane-dense (rows, OW*Cout) slab ------------------------------
    r_pad = m_pad // ow
    conv2 = conv_flat.reshape(r_pad, ow * cout)          # free metadata reshape
    scale_t = jnp.tile(scale, (ow,)).reshape(1, ow * cout)
    shift_t = jnp.tile(shift, (ow,)).reshape(1, ow * cout)

    out2 = pl.pallas_call(
        _bn_act_kernel,
        out_shape=jax.ShapeDtypeStruct((r_pad, ow * cout), jnp.float32),
        grid=(num_tiles,),
        in_specs=[
            pl.BlockSpec((tr, ow * cout), lambda i: (i, 0)),
            pl.BlockSpec((1, ow * cout), lambda i: (0, 0)),
            pl.BlockSpec((1, ow * cout), lambda i: (0, 0)),
        ],
        out_specs=pl.BlockSpec((tr, ow * cout), lambda i: (i, 0)),
        compiler_params=cparams,
    )(conv2, scale_t, shift_t)

    # TODO(synk): returning NHWC directly would avoid this extra XLA transpose pass.
    out = out2[:n * oh].reshape(n, oh, ow, cout)
    return jnp.transpose(out, (0, 3, 1, 2))


# --------------------------- parameter init ------------------------------------
def init_params(key, cin, cout, kernel_size=4):
    kw_key, kb_key, _ = jax.random.split(key, 3)
    fan_in = cin * kernel_size * kernel_size
    fan_out = cout * kernel_size * kernel_size
    gain = math.sqrt(2.0 / (1.0 + LEAKY_SLOPE ** 2))       # calculate_gain('leaky_relu')
    limit = gain * math.sqrt(6.0 / (fan_in + fan_out))     # xavier_uniform_
    weight = jax.random.uniform(
        kw_key, (cout, cin, kernel_size, kernel_size),
        minval=-limit, maxval=limit, dtype=jnp.float32)
    b_lim = 1.0 / math.sqrt(fan_in)                        # Conv2d default bias init
    bias = jax.random.uniform(kb_key, (cout,), minval=-b_lim, maxval=b_lim,
                              dtype=jnp.float32)
    gamma = jnp.ones((cout,), jnp.float32)                 # BatchNorm2d defaults
    beta = jnp.zeros((cout,), jnp.float32)
    return weight, bias, gamma, beta


# ------------------------------ reference --------------------------------------
def _reference(x, weight, bias, gamma, beta):
    y = jax.lax.conv_general_dilated(
        x, weight, window_strides=(1, 1), padding="VALID",
        dimension_numbers=("NCHW", "OIHW", "NCHW"))
    y = y + bias.reshape(1, -1, 1, 1)
    mean = jnp.mean(y, axis=(0, 2, 3), keepdims=True)
    var = jnp.mean((y - mean) ** 2, axis=(0, 2, 3), keepdims=True)
    y = (y - mean) * jax.lax.rsqrt(var + BN_EPS)
    y = y * gamma.reshape(1, -1, 1, 1) + beta.reshape(1, -1, 1, 1)
    return jnp.where(y > 0, y, LEAKY_SLOPE * y)


if __name__ == "__main__":
    key = jax.random.PRNGKey(0)
    kx, kp = jax.random.split(key)

    N, CIN, H, W = 2, 4, 16, 16
    COUT, KSIZE = 8, 4

    x = jax.random.normal(kx, (N, CIN, H, W), dtype=jnp.float32)
    weight, bias, gamma, beta = init_params(kp, CIN, COUT, KSIZE)
    ref = _reference(x, weight, bias, gamma, beta)

    # f32 MXU path, default tiling (single M tile at this toy size).
    out = jax.block_until_ready(conv_block4_forward(x, weight, bias, gamma, beta))
    assert out.shape == ref.shape == (N, COUT, H - KSIZE + 1, W - KSIZE + 1)
    assert jnp.allclose(out, ref, atol=1e-4, rtol=1e-4)

    # f32, forced multi-tile path (exercises row padding + cross-tile BN stats).
    out_mt = jax.block_until_ready(conv_block4_forward(
        x, weight, bias, gamma, beta, tile_rows_target=8))
    assert jnp.allclose(out_mt, ref, atol=1e-4, rtol=1e-4)

    # bf16 MXU inputs (v6e/v7x fast path); accumulation and BN stats stay f32.
    out_bf16 = jax.block_until_ready(conv_block4_forward(
        x, weight, bias, gamma, beta, use_bf16_mxu=True))
    assert jnp.allclose(out_bf16, ref, atol=5e-2, rtol=5e-2)

    print("KERNEL_OK")
</pallas_src>

<mosaic_0001>
module attributes {stable_mosaic.version = 11 : i64} {
  func.func @_conv_stats_kernel(%arg0: i32, %arg1: memref<520x64xf32, #tpu.memory_space<vmem>>, %arg2: memref<64x8xf32, #tpu.memory_space<vmem>>, %arg3: memref<520x8xf32, #tpu.memory_space<vmem>>, %arg4: memref<1x1x8xf32, #tpu.memory_space<vmem>>, %arg5: memref<1x1x8xf32, #tpu.memory_space<vmem>>) attributes {dimension_semantics = [#tpu.dimension_semantics<parallel>], iteration_bounds = array<i64: 1>, scalar_prefetch = 0 : i64, scratch_operands = 0 : i64, tpu.core_type = #tpu.core_type<tc>, window_params = [{transform_indices = @transform_0, window_bounds = array<i64: 520, 64>}, {pipeline_mode = #tpu.pipeline_mode<synchronous>, transform_indices = @transform_1, window_bounds = array<i64: 64, 8>}, {transform_indices = @transform_2, window_bounds = array<i64: 520, 8>}, {transform_indices = @transform_3, window_bounds = array<i64: 1, 1, 8>}, {transform_indices = @transform_4, window_bounds = array<i64: 1, 1, 8>}]} {
    %c0 = arith.constant 0 : index
    %c0_0 = arith.constant 0 : index
    %0 = vector.load %arg1[%c0, %c0_0] : memref<520x64xf32, #tpu.memory_space<vmem>>, vector<520x64xf32>
    %c0_1 = arith.constant 0 : index
    %c0_2 = arith.constant 0 : index
    %1 = vector.load %arg2[%c0_1, %c0_2] : memref<64x8xf32, #tpu.memory_space<vmem>>, vector<64x8xf32>
    %cst = arith.constant dense<0.000000e+00> : vector<520x8xf32>
    %2 = tpu.matmul %0, %1, %cst {dimension_numbers = #tpu.dot_dimension_numbers<[1], [0], [0], [1], [0, 0, 1, 1], [], []>} : vector<520x64xf32>, vector<64x8xf32>, vector<520x8xf32> -> vector<520x8xf32>
    %c0_3 = arith.constant 0 : index
    %c0_4 = arith.constant 0 : index
    %3 = vector.load %arg3[%c0_3, %c0_4] : memref<520x8xf32, #tpu.memory_space<vmem>>, vector<520x8xf32>
    tpu.vector_store %arg3[%c0_3, %c0_4], %2 {strides = array<i32>} : memref<520x8xf32, #tpu.memory_space<vmem>>, vector<520x8xf32>,
    %cst_5 = arith.constant dense<0.000000e+00> : vector<8xf32>
    %4 = vector.multi_reduction <add>, %2, %cst_5 [0] : vector<520x8xf32> to vector<8xf32>
    %5 = vector.shape_cast %4 : vector<8xf32> to vector<1x8xf32>
    %6 = arith.mulf %2, %2 : vector<520x8xf32>
    %cst_6 = arith.constant dense<0.000000e+00> : vector<8xf32>
    %7 = vector.multi_reduction <add>, %6, %cst_6 [0] : vector<520x8xf32> to vector<8xf32>
    %8 = vector.shape_cast %7 : vector<8xf32> to vector<1x8xf32>
    %9 = vector.shape_cast %5 : vector<1x8xf32> to vector<1x1x8xf32>
    %c0_7 = arith.constant 0 : index
    %c0_8 = arith.constant 0 : index
    %c0_9 = arith.constant 0 : index
    %10 = vector.load %arg4[%c0_7, %c0_8, %c0_9] : memref<1x1x8xf32, #tpu.memory_space<vmem>>, vector<1x1x8xf32>
    tpu.vector_store %arg4[%c0_7, %c0_8, %c0_9], %9 {strides = array<i32>} : memref<1x1x8xf32, #tpu.memory_space<vmem>>, vector<1x1x8xf32>,
    %11 = vector.shape_cast %8 : vector<1x8xf32> to vector<1x1x8xf32>
    %c0_10 = arith.constant 0 : index
    %c0_11 = arith.constant 0 : index
    %c0_12 = arith.constant 0 : index
    %12 = vector.load %arg5[%c0_10, %c0_11, %c0_12] : memref<1x1x8xf32, #tpu.memory_space<vmem>>, vector<1x1x8xf32>
    tpu.vector_store %arg5[%c0_10, %c0_11, %c0_12], %11 {strides = array<i32>} : memref<1x1x8xf32, #tpu.memory_space<vmem>>, vector<1x1x8xf32>,
    return
  }
  func.func @transform_0(%arg0: i32) -> (i32, i32) {
    %c0_i32 = arith.constant 0 : i32
    %c0_i32_0 = arith.constant 0 : i32
    return %arg0, %c0_i32 : i32, i32
  }
  func.func @transform_1(%arg0: i32) -> (i32, i32) {
    %c0_i32 = arith.constant 0 : i32
    %c0_i32_0 = arith.constant 0 : i32
    %c0_i32_1 = arith.constant 0 : i32
    return %c0_i32, %c0_i32_0 : i32, i32
  }
  func.func @transform_2(%arg0: i32) -> (i32, i32) {
    %c0_i32 = arith.constant 0 : i32
    %c0_i32_0 = arith.constant 0 : i32
    return %arg0, %c0_i32 : i32, i32
  }
  func.func @transform_3(%arg0: i32) -> (i32, i32, i32) {
    %c0_i32 = arith.constant 0 : i32
    %c0_i32_0 = arith.constant 0 : i32
    %c0_i32_1 = arith.constant 0 : i32
    return %arg0, %c0_i32, %c0_i32_0 : i32, i32, i32
  }
  func.func @transform_4(%arg0: i32) -> (i32, i32, i32) {
    %c0_i32 = arith.constant 0 : i32
    %c0_i32_0 = arith.constant 0 : i32
    %c0_i32_1 = arith.constant 0 : i32
    return %arg0, %c0_i32, %c0_i32_0 : i32, i32, i32
  }
}

</mosaic_0001>

<llo_original>
// kernel: tpu_custom_call.1
$region0: #{tpu_custom_call.1}
  #allocation0 [shape = 'u32[]', space=smem, size = 0x4, offset = 0x4, fixed_abs, tag = 'smem constant byte address 0x4 - core index']
  #allocation1 [shape = 'u32[72,128]{1,0:T(1,128)}', space=vmem, size = 0x9000, scoped, tag = 'internal scratch']
  %s0 = inlined_call_operand.vmem [shape: f32[520,64], index: 0, kind: input, shape index: {}]
  %s1 = inlined_call_operand.vmem [shape: f32[64,8], index: 1, kind: input, shape index: {}]
  %s2 = inlined_call_operand.vmem [shape: f32[520,8], index: 2, kind: output, shape index: {0}]
  %s3 = inlined_call_operand.hbm [shape: f32[1,1,8], index: 3, kind: output, shape index: {1}]
  %s4 = inlined_call_operand.hbm [shape: f32[1,1,8], index: 4, kind: output, shape index: {2}]
  %5 = xla_tuple %s2, %s3, %s4
  %s6 = sld [smem:[#allocation0]]
  $region34: #{tpu_custom_call.1} parent=0
    _
  %s8 = ssub.s32 1, %s6
  %s9 = scalar_select 0, %s8, %s6
  $region1: #{tpu_custom_call.1} parent=0
    #allocation2 [shape = 'u8[512]{0}', space=vmem, size = 0x400, scoped, tag = 'output window, operand 1, single buffered']
    #allocation3 [shape = 's32[1]{0}', space=sflag, size = 0x4, scoped, tag = 'scoped memory for tpu_custom_call.1']
    #allocation4 [shape = 'u8[512]{0}', space=vmem, size = 0x400, scoped, tag = 'output window, operand 2, single buffered']
    #allocation5 [shape = 's32[1]{0}', space=sflag, size = 0x4, scoped, tag = 'scoped memory for tpu_custom_call.1']
    %10 = vsyncpa [#allocation3], 0
    %11 = vsyncpa [#allocation5], 0
    // Predicated region
    $region2: #{tpu_custom_call.1} parent=1 // pred_check
      _
    $region3: #{tpu_custom_call.1} parent=1 // pred_check_branch
      %13 = sbr.rel (0) target = $region5
    $region4: #{tpu_custom_call.1} parent=1 // pred_region
      _
    $region5: #{tpu_custom_call.1} parent=1 // pred_fallthru
      _
    // Predicated region
    $region6: #{tpu_custom_call.1} parent=1 // pred_check
      _
    $region7: #{tpu_custom_call.1} parent=1 // pred_check_branch
      %15 = sbr.rel (0) target = $region9
    $region8: #{tpu_custom_call.1} parent=1 // pred_region
      _
    $region9: #{tpu_custom_call.1} parent=1 // pred_fallthru
      _
    %v16 = vld [vmem:[%s0] sm:$0xff]
    %v17 = vld [vmem:[%s0 + $0x8] sm:$0xff]
    %v18 = vld [vmem:[%s0 + $0x10] sm:$0xff]
    %v19 = vld [vmem:[%s0 + $0x18] sm:$0xff]
    %v20 = vld [vmem:[%s0 + $0x20] sm:$0xff]
    %v21 = vld [vmem:[%s0 + $0x28] sm:$0xff]
    %v22 = vld [vmem:[%s0 + $0x30] sm:$0xff]
    %v23 = vld [vmem:[%s0 + $0x38] sm:$0xff]
    %v24 = vld [vmem:[%s0 + $0x40] sm:$0xff]
    %v25 = vld [vmem:[%s0 + $0x48] sm:$0xff]
    %v26 = vld [vmem:[%s0 + $0x50] sm:$0xff]
    %v27 = vld [vmem:[%s0 + $0x58] sm:$0xff]
    %v28 = vld [vmem:[%s0 + $0x60] sm:$0xff]
    %v29 = vld [vmem:[%s0 + $0x68] sm:$0xff]
    %v30 = vld [vmem:[%s0 + $0x70] sm:$0xff]
    %v31 = vld [vmem:[%s0 + $0x78] sm:$0xff]
    %v32 = vld [vmem:[%s0 + $0x80] sm:$0xff]
    %v33 = vld [vmem:[%s0 + $0x88] sm:$0xff]
    %v34 = vld [vmem:[%s0 + $0x90] sm:$0xff]
    %v35 = vld [vmem:[%s0 + $0x98] sm:$0xff]
    %v36 = vld [vmem:[%s0 + $0xa0] sm:$0xff]
    %v37 = vld [vmem:[%s0 + $0xa8] sm:$0xff]
    %v38 = vld [vmem:[%s0 + $0xb0] sm:$0xff]
    %v39 = vld [vmem:[%s0 + $0xb8] sm:$0xff]
    %v40 = vld [vmem:[%s0 + $0xc0] sm:$0xff]
    %v41 = vld [vmem:[%s0 + $0xc8] sm:$0xff]
    %v42 = vld [vmem:[%s0 + $0xd0] sm:$0xff]
    %v43 = vld [vmem:[%s0 + $0xd8] sm:$0xff]
    %v44 = vld [vmem:[%s0 + $0xe0] sm:$0xff]
    %v45 = vld [vmem:[%s0 + $0xe8] sm:$0xff]
    %v46 = vld [vmem:[%s0 + $0xf0] sm:$0xff]
    %v47 = vld [vmem:[%s0 + $0xf8] sm:$0xff]
    %v48 = vld [vmem:[%s0 + $0x100] sm:$0xff]
    %v49 = vld [vmem:[%s0 + $0x108] sm:$0xff]
    %v50 = vld [vmem:[%s0 + $0x110] sm:$0xff]
    %v51 = vld [vmem:[%s0 + $0x118] sm:$0xff]
    %v52 = vld [vmem:[%s0 + $0x120] sm:$0xff]
    %v53 = vld [vmem:[%s0 + $0x128] sm:$0xff]
    %v54 = vld [vmem:[%s0 + $0x130] sm:$0xff]
    %v55 = vld [vmem:[%s0 + $0x138] sm:$0xff]
    %v56 = vld [vmem:[%s0 + $0x140] sm:$0xff]
    %v57 = vld [vmem:[%s0 + $0x148] sm:$0xff]
    %v58 = vld [vmem:[%s0 + $0x150] sm:$0xff]
    %v59 = vld [vmem:[%s0 + $0x158] sm:$0xff]
    %v60 = vld [vmem:[%s0 + $0x160] sm:$0xff]
    %v61 = vld [vmem:[%s0 + $0x168] sm:$0xff]
    %v62 = vld [vmem:[%s0 + $0x170] sm:$0xff]
    %v63 = vld [vmem:[%s0 + $0x178] sm:$0xff]
    %v64 = vld [vmem:[%s0 + $0x180] sm:$0xff]
    %v65 = vld [vmem:[%s0 + $0x188] sm:$0xff]
    %v66 = vld [vmem:[%s0 + $0x190] sm:$0xff]
    %v67 = vld [vmem:[%s0 + $0x198] sm:$0xff]
    %v68 = vld [vmem:[%s0 + $0x1a0] sm:$0xff]
    %v69 = vld [vmem:[%s0 + $0x1a8] sm:$0xff]
    %v70 = vld [vmem:[%s0 + $0x1b0] sm:$0xff]
    %v71 = vld [vmem:[%s0 + $0x1b8] sm:$0xff]
    %v72 = vld [vmem:[%s0 + $0x1c0] sm:$0xff]
    %v73 = vld [vmem:[%s0 + $0x1c8] sm:$0xff]
    %v74 = vld [vmem:[%s0 + $0x1d0] sm:$0xff]
    %v75 = vld [vmem:[%s0 + $0x1d8] sm:$0xff]
    %v76 = vld [vmem:[%s0 + $0x1e0] sm:$0xff]
    %v77 = vld [vmem:[%s0 + $0x1e8] sm:$0xff]
    %v78 = vld [vmem:[%s0 + $0x1f0] sm:$0xff]
    %v79 = vld [vmem:[%s0 + $0x1f8] sm:$0xff]
    %v80 = vld [vmem:[%s0 + $0x200] sm:$0xff]
    %v81 = vld [vmem:[%s1] sm:$0xff]
    %v82 = vld [vmem:[%s1 + $0x8] sm:$0xff]
    %v83 = vld [vmem:[%s1 + $0x10] sm:$0xff]
    %v84 = vld [vmem:[%s1 + $0x18] sm:$0xff]
    %v85 = vld [vmem:[%s1 + $0x20] sm:$0xff]
    %v86 = vld [vmem:[%s1 + $0x28] sm:$0xff]
    %v87 = vld [vmem:[%s1 + $0x30] sm:$0xff]
    %v88 = vld [vmem:[%s1 + $0x38] sm:$0xff]
    %vm89 = vcmask 523264
    %v91 = vsel %vm89, %v16, 0
    %v94 = vsel %vm89, %v17, 0
    %v97 = vsel %vm89, %v18, 0
    %v100 = vsel %vm89, %v19, 0
    %v103 = vsel %vm89, %v20, 0
    %v106 = vsel %vm89, %v21, 0
    %v109 = vsel %vm89, %v22, 0
    %v112 = vsel %vm89, %v23, 0
    %v115 = vsel %vm89, %v24, 0
    %v118 = vsel %vm89, %v25, 0
    %v121 = vsel %vm89, %v26, 0
    %v124 = vsel %vm89, %v27, 0
    %v127 = vsel %vm89, %v28, 0
    %v130 = vsel %vm89, %v29, 0
    %v133 = vsel %vm89, %v30, 0
    %v136 = vsel %vm89, %v31, 0
    %v139 = vsel %vm89, %v32, 0
    %v142 = vsel %vm89, %v33, 0
    %v145 = vsel %vm89, %v34, 0
    %v148 = vsel %vm89, %v35, 0
    %v151 = vsel %vm89, %v36, 0
    %v154 = vsel %vm89, %v37, 0
    %v157 = vsel %vm89, %v38, 0
    %v160 = vsel %vm89, %v39, 0
    %v163 = vsel %vm89, %v40, 0
    %v166 = vsel %vm89, %v41, 0
    %v169 = vsel %vm89, %v42, 0
    %v172 = vsel %vm89, %v43, 0
    %v175 = vsel %vm89, %v44, 0
    %v178 = vsel %vm89, %v45, 0
    %v181 = vsel %vm89, %v46, 0
    %v184 = vsel %vm89, %v47, 0
    %v187 = vsel %vm89, %v48, 0
    %v190 = vsel %vm89, %v49, 0
    %v193 = vsel %vm89, %v50, 0
    %v196 = vsel %vm89, %v51, 0
    %v199 = vsel %vm89, %v52, 0
    %v202 = vsel %vm89, %v53, 0
    %v205 = vsel %vm89, %v54, 0
    %v208 = vsel %vm89, %v55, 0
    %v211 = vsel %vm89, %v56, 0
    %v214 = vsel %vm89, %v57, 0
    %v217 = vsel %vm89, %v58, 0
    %v220 = vsel %vm89, %v59, 0
    %v223 = vsel %vm89, %v60, 0
    %v226 = vsel %vm89, %v61, 0
    %v229 = vsel %vm89, %v62, 0
    %v232 = vsel %vm89, %v63, 0
    %v235 = vsel %vm89, %v64, 0
    %v238 = vsel %vm89, %v65, 0
    %v241 = vsel %vm89, %v66, 0
    %v244 = vsel %vm89, %v67, 0
    %v247 = vsel %vm89, %v68, 0
    %v250 = vsel %vm89, %v69, 0
    %v253 = vsel %vm89, %v70, 0
    %v256 = vsel %vm89, %v71, 0
    %v259 = vsel %vm89, %v72, 0
    %v262 = vsel %vm89, %v73, 0
    %v265 = vsel %vm89, %v74, 0
    %v268 = vsel %vm89, %v75, 0
    %v271 = vsel %vm89, %v76, 0
    %v274 = vsel %vm89, %v77, 0
    %v277 = vsel %vm89, %v78, 0
    %v280 = vsel %vm89, %v79, 0
    %v283 = vsel %vm89, %v80, 0
    %285 = vmatpush.msra.mxu0 0.0
    %286 = vmatpush.msra.mxu0 0.0
    %287 = vmatpush.msra.mxu0 0.0
    %288 = vmatpush.msra.mxu0 0.0
    %289 = vmatpush.msra.mxu0 0.0
    %290 = vmatpush.msra.mxu0 0.0
    %291 = vmatpush.msra.mxu0 0.0
    %292 = vmatpush.msra.mxu0 0.0
    %293 = vmatpush.msra.mxu0 %v88
    %294 = vmatpush.msra.mxu0 %v87
    %295 = vmatpush.msra.mxu0 %v86
    %296 = vmatpush.msra.mxu0 %v85
    %297 = vmatpush.msra.mxu0 %v84
    %298 = vmatpush.msra.mxu0 %v83
    %299 = vmatpush.msra.mxu0 %v82
    %300 = vmatpush.msra.mxu0 %v81
    %301 = vmatmul.f32.gmra.mxu0 %v91
    %v302 = vpop.f32.mrf.mxu0
    %v303 = vadd.f32 0.0, %v302
    %304 = vmatmul.f32.gmra.mxu0 %v94
    %v305 = vpop.f32.mrf.mxu0
    %v306 = vadd.f32 0.0, %v305
    %307 = vmatmul.f32.gmra.mxu0 %v97
    %v308 = vpop.f32.mrf.mxu0
    %v309 = vadd.f32 0.0, %v308
    %310 = vmatmul.f32.gmra.mxu0 %v100
    %v311 = vpop.f32.mrf.mxu0
    %v312 = vadd.f32 0.0, %v311
    %313 = vmatmul.f32.gmra.mxu0 %v103
    %v314 = vpop.f32.mrf.mxu0
    %v315 = vadd.f32 0.0, %v314
    %316 = vmatmul.f32.gmra.mxu0 %v106
    %v317 = vpop.f32.mrf.mxu0
    %v318 = vadd.f32 0.0, %v317
    %319 = vmatmul.f32.gmra.mxu0 %v109
    %v320 = vpop.f32.mrf.mxu0
    %v321 = vadd.f32 0.0, %v320
    %322 = vmatmul.f32.gmra.mxu0 %v112
    %v323 = vpop.f32.mrf.mxu0
    %v324 = vadd.f32 0.0, %v323
    %325 = vmatmul.f32.gmra.mxu0 %v115
    %v326 = vpop.f32.mrf.mxu0
    %v327 = vadd.f32 0.0, %v326
    %328 = vmatmul.f32.gmra.mxu0 %v118
    %v329 = vpop.f32.mrf.mxu0
    %v330 = vadd.f32 0.0, %v329
    %331 = vmatmul.f32.gmra.mxu0 %v121
    %v332 = vpop.f32.mrf.mxu0
    %v333 = vadd.f32 0.0, %v332
    %334 = vmatmul.f32.gmra.mxu0 %v124
    %v335 = vpop.f32.mrf.mxu0
    %v336 = vadd.f32 0.0, %v335
    %337 = vmatmul.f32.gmra.mxu0 %v127
    %v338 = vpop.f32.mrf.mxu0
    %v339 = vadd.f32 0.0, %v338
    %340 = vmatmul.f32.gmra.mxu0 %v130
    %v341 = vpop.f32.mrf.mxu0
    %v342 = vadd.f32 0.0, %v341
    %343 = vmatmul.f32.gmra.mxu0 %v133
    %v344 = vpop.f32.mrf.mxu0
    %v345 = vadd.f32 0.0, %v344
    %346 = vmatmul.f32.gmra.mxu0 %v136
    %v347 = vpop.f32.mrf.mxu0
    %v348 = vadd.f32 0.0, %v347
    %349 = vmatmul.f32.gmra.mxu0 %v139
    %v350 = vpop.f32.mrf.mxu0
    %v351 = vadd.f32 0.0, %v350
    %352 = vmatmul.f32.gmra.mxu0 %v142
    %v353 = vpop.f32.mrf.mxu0
    %v354 = vadd.f32 0.0, %v353
    %355 = vmatmul.f32.gmra.mxu0 %v145
    %v356 = vpop.f32.mrf.mxu0
    %v357 = vadd.f32 0.0, %v356
    %358 = vmatmul.f32.gmra.mxu0 %v148
    %v359 = vpop.f32.mrf.mxu0
    %v360 = vadd.f32 0.0, %v359
    %361 = vmatmul.f32.gmra.mxu0 %v151
    %v362 = vpop.f32.mrf.mxu0
    %v363 = vadd.f32 0.0, %v362
    %364 = vmatmul.f32.gmra.mxu0 %v154
    %v365 = vpop.f32.mrf.mxu0
    %v366 = vadd.f32 0.0, %v365
    %367 = vmatmul.f32.gmra.mxu0 %v157
    %v368 = vpop.f32.mrf.mxu0
    %v369 = vadd.f32 0.0, %v368
    %370 = vmatmul.f32.gmra.mxu0 %v160
    %v371 = vpop.f32.mrf.mxu0
    %v372 = vadd.f32 0.0, %v371
    %373 = vmatmul.f32.gmra.mxu0 %v163
    %v374 = vpop.f32.mrf.mxu0
    %v375 = vadd.f32 0.0, %v374
    %376 = vmatmul.f32.gmra.mxu0 %v166
    %v377 = vpop.f32.mrf.mxu0
    %v378 = vadd.f32 0.0, %v377
    %379 = vmatmul.f32.gmra.mxu0 %v169
    %v380 = vpop.f32.mrf.mxu0
    %v381 = vadd.f32 0.0, %v380
    %382 = vmatmul.f32.gmra.mxu0 %v172
    %v383 = vpop.f32.mrf.mxu0
    %v384 = vadd.f32 0.0, %v383
    %385 = vmatmul.f32.gmra.mxu0 %v175
    %v386 = vpop.f32.mrf.mxu0
    %v387 = vadd.f32 0.0, %v386
    %388 = vmatmul.f32.gmra.mxu0 %v178
    %v389 = vpop.f32.mrf.mxu0
    %v390 = vadd.f32 0.0, %v389
    %391 = vmatmul.f32.gmra.mxu0 %v181
    %v392 = vpop.f32.mrf.mxu0
    %v393 = vadd.f32 0.0, %v392
    %394 = vmatmul.f32.gmra.mxu0 %v184
    %v395 = vpop.f32.mrf.mxu0
    %v396 = vadd.f32 0.0, %v395
    %397 = vmatmul.f32.gmra.mxu0 %v187
    %v398 = vpop.f32.mrf.mxu0
    %v399 = vadd.f32 0.0, %v398
    %400 = vmatmul.f32.gmra.mxu0 %v190
    %v401 = vpop.f32.mrf.mxu0
    %v402 = vadd.f32 0.0, %v401
    %403 = vmatmul.f32.gmra.mxu0 %v193
    %v404 = vpop.f32.mrf.mxu0
    %v405 = vadd.f32 0.0, %v404
    %406 = vmatmul.f32.gmra.mxu0 %v196
    %v407 = vpop.f32.mrf.mxu0
    %v408 = vadd.f32 0.0, %v407
    %409 = vmatmul.f32.gmra.mxu0 %v199
    %v410 = vpop.f32.mrf.mxu0
    %v411 = vadd.f32 0.0, %v410
    %412 = vmatmul.f32.gmra.mxu0 %v202
    %v413 = vpop.f32.mrf.mxu0
    %v414 = vadd.f32 0.0, %v413
    %415 = vmatmul.f32.gmra.mxu0 %v205
    %v416 = vpop.f32.mrf.mxu0
    %v417 = vadd.f32 0.0, %v416
    %418 = vmatmul.f32.gmra.mxu0 %v208
    %v419 = vpop.f32.mrf.mxu0
    %v420 = vadd.f32 0.0, %v419
    %421 = vmatmul.f32.gmra.mxu0 %v211
    %v422 = vpop.f32.mrf.mxu0
    %v423 = vadd.f32 0.0, %v422
    %424 = vmatmul.f32.gmra.mxu0 %v214
    %v425 = vpop.f32.mrf.mxu0
    %v426 = vadd.f32 0.0, %v425
    %427 = vmatmul.f32.gmra.mxu0 %v217
    %v428 = vpop.f32.mrf.mxu0
    %v429 = vadd.f32 0.0, %v428
    %430 = vmatmul.f32.gmra.mxu0 %v220
    %v431 = vpop.f32.mrf.mxu0
    %v432 = vadd.f32 0.0, %v431
    %433 = vmatmul.f32.gmra.mxu0 %v223
    %v434 = vpop.f32.mrf.mxu0
    %v435 = vadd.f32 0.0, %v434
    %436 = vmatmul.f32.gmra.mxu0 %v226
    %v437 = vpop.f32.mrf.mxu0
    %v438 = vadd.f32 0.0, %v437
    %439 = vmatmul.f32.gmra.mxu0 %v229
    %v440 = vpop.f32.mrf.mxu0
    %v441 = vadd.f32 0.0, %v440
    %442 = vmatmul.f32.gmra.mxu0 %v232
    %v443 = vpop.f32.mrf.mxu0
    %v444 = vadd.f32 0.0, %v443
    %445 = vmatmul.f32.gmra.mxu0 %v235
    %v446 = vpop.f32.mrf.mxu0
    %v447 = vadd.f32 0.0, %v446
    %448 = vmatmul.f32.gmra.mxu0 %v238
    %v449 = vpop.f32.mrf.mxu0
    %v450 = vadd.f32 0.0, %v449
    %451 = vmatmul.f32.gmra.mxu0 %v241
    %v452 = vpop.f32.mrf.mxu0
    %v453 = vadd.f32 0.0, %v452
    %454 = vmatmul.f32.gmra.mxu0 %v244
    %v455 = vpop.f32.mrf.mxu0
    %v456 = vadd.f32 0.0, %v455
    %457 = vmatmul.f32.gmra.mxu0 %v247
    %v458 = vpop.f32.mrf.mxu0
    %v459 = vadd.f32 0.0, %v458
    %460 = vmatmul.f32.gmra.mxu0 %v250
    %v461 = vpop.f32.mrf.mxu0
    %v462 = vadd.f32 0.0, %v461
    %463 = vmatmul.f32.gmra.mxu0 %v253
    %v464 = vpop.f32.mrf.mxu0
    %v465 = vadd.f32 0.0, %v464
    %466 = vmatmul.f32.gmra.mxu0 %v256
    %v467 = vpop.f32.mrf.mxu0
    %v468 = vadd.f32 0.0, %v467
    %469 = vmatmul.f32.gmra.mxu0 %v259
    %v470 = vpop.f32.mrf.mxu0
    %v471 = vadd.f32 0.0, %v470
    %472 = vmatmul.f32.gmra.mxu0 %v262
    %v473 = vpop.f32.mrf.mxu0
    %v474 = vadd.f32 0.0, %v473
    %475 = vmatmul.f32.gmra.mxu0 %v265
    %v476 = vpop.f32.mrf.mxu0
    %v477 = vadd.f32 0.0, %v476
    %478 = vmatmul.f32.gmra.mxu0 %v268
    %v479 = vpop.f32.mrf.mxu0
    %v480 = vadd.f32 0.0, %v479
    %481 = vmatmul.f32.gmra.mxu0 %v271
    %v482 = vpop.f32.mrf.mxu0
    %v483 = vadd.f32 0.0, %v482
    %484 = vmatmul.f32.gmra.mxu0 %v274
    %v485 = vpop.f32.mrf.mxu0
    %v486 = vadd.f32 0.0, %v485
    %487 = vmatmul.f32.gmra.mxu0 %v277
    %v488 = vpop.f32.mrf.mxu0
    %v489 = vadd.f32 0.0, %v488
    %490 = vmatmul.f32.gmra.mxu0 %v280
    %v491 = vpop.f32.mrf.mxu0
    %v492 = vadd.f32 0.0, %v491
    %493 = vmatmul.f32.gmra.mxu0 %v283
    %v494 = vpop.f32.mrf.mxu0
    %v495 = vadd.f32 0.0, %v494
    %496 = vdwg.mxu0
    %vm497 = vcmask 64512
    %498 = vst.msk [vmem:[%s2] sm:$0xff] %vm497, %v303
    %499 = vst.msk [vmem:[%s2 + $0x8] sm:$0xff] %vm497, %v306
    %500 = vst.msk [vmem:[%s2 + $0x10] sm:$0xff] %vm497, %v309
    %501 = vst.msk [vmem:[%s2 + $0x18] sm:$0xff] %vm497, %v312
    %502 = vst.msk [vmem:[%s2 + $0x20] sm:$0xff] %vm497, %v315
    %503 = vst.msk [vmem:[%s2 + $0x28] sm:$0xff] %vm497, %v318
    %504 = vst.msk [vmem:[%s2 + $0x30] sm:$0xff] %vm497, %v321
    %505 = vst.msk [vmem:[%s2 + $0x38] sm:$0xff] %vm497, %v324
    %506 = vst.msk [vmem:[%s2 + $0x40] sm:$0xff] %vm497, %v327
    %507 = vst.msk [vmem:[%s2 + $0x48] sm:$0xff] %vm497, %v330
    %508 = vst.msk [vmem:[%s2 + $0x50] sm:$0xff] %vm497, %v333
    %509 = vst.msk [vmem:[%s2 + $0x58] sm:$0xff] %vm497, %v336
    %510 = vst.msk [vmem:[%s2 + $0x60] sm:$0xff] %vm497, %v339
    %511 = vst.msk [vmem:[%s2 + $0x68] sm:$0xff] %vm497, %v342
    %512 = vst.msk [vmem:[%s2 + $0x70] sm:$0xff] %vm497, %v345
    %513 = vst.msk [vmem:[%s2 + $0x78] sm:$0xff] %vm497, %v348
    %514 = vst.msk [vmem:[%s2 + $0x80] sm:$0xff] %vm497, %v351
    %515 = vst.msk [vmem:[%s2 + $0x88] sm:$0xff] %vm497, %v354
    %516 = vst.msk [vmem:[%s2 + $0x90] sm:$0xff] %vm497, %v357
    %517 = vst.msk [vmem:[%s2 + $0x98] sm:$0xff] %vm497, %v360
    %518 = vst.msk [vmem:[%s2 + $0xa0] sm:$0xff] %vm497, %v363
    %519 = vst.msk [vmem:[%s2 + $0xa8] sm:$0xff] %vm497, %v366
    %520 = vst.msk [vmem:[%s2 + $0xb0] sm:$0xff] %vm497, %v369
    %521 = vst.msk [vmem:[%s2 + $0xb8] sm:$0xff] %vm497, %v372
    %522 = vst.msk [vmem:[%s2 + $0xc0] sm:$0xff] %vm497, %v375
    %523 = vst.msk [vmem:[%s2 + $0xc8] sm:$0xff] %vm497, %v378
    %524 = vst.msk [vmem:[%s2 + $0xd0] sm:$0xff] %vm497, %v381
    %525 = vst.msk [vmem:[%s2 + $0xd8] sm:$0xff] %vm497, %v384
    %526 = vst.msk [vmem:[%s2 + $0xe0] sm:$0xff] %vm497, %v387
    %527 = vst.msk [vmem:[%s2 + $0xe8] sm:$0xff] %vm497, %v390
    %528 = vst.msk [vmem:[%s2 + $0xf0] sm:$0xff] %vm497, %v393
    %529 = vst.msk [vmem:[%s2 + $0xf8] sm:$0xff] %vm497, %v396
    %530 = vst.msk [vmem:[%s2 + $0x100] sm:$0xff] %vm497, %v399
    %531 = vst.msk [vmem:[%s2 + $0x108] sm:$0xff] %vm497, %v402
    %532 = vst.msk [vmem:[%s2 + $0x110] sm:$0xff] %vm497, %v405
    %533 = vst.msk [vmem:[%s2 + $0x118] sm:$0xff] %vm497, %v408
    %534 = vst.msk [vmem:[%s2 + $0x120] sm:$0xff] %vm497, %v411
    %535 = vst.msk [vmem:[%s2 + $0x128] sm:$0xff] %vm497, %v414
    %536 = vst.msk [vmem:[%s2 + $0x130] sm:$0xff] %vm497, %v417
    %537 = vst.msk [vmem:[%s2 + $0x138] sm:$0xff] %vm497, %v420
    %538 = vst.msk [vmem:[%s2 + $0x140] sm:$0xff] %vm497, %v423
    %539 = vst.msk [vmem:[%s2 + $0x148] sm:$0xff] %vm497, %v426
    %540 = vst.msk [vmem:[%s2 + $0x150] sm:$0xff] %vm497, %v429
    %541 = vst.msk [vmem:[%s2 + $0x158] sm:$0xff] %vm497, %v432
    %542 = vst.msk [vmem:[%s2 + $0x160] sm:$0xff] %vm497, %v435
    %543 = vst.msk [vmem:[%s2 + $0x168] sm:$0xff] %vm497, %v438
    %544 = vst.msk [vmem:[%s2 + $0x170] sm:$0xff] %vm497, %v441
    %545 = vst.msk [vmem:[%s2 + $0x178] sm:$0xff] %vm497, %v444
    %546 = vst.msk [vmem:[%s2 + $0x180] sm:$0xff] %vm497, %v447
    %547 = vst.msk [vmem:[%s2 + $0x188] sm:$0xff] %vm497, %v450
    %548 = vst.msk [vmem:[%s2 + $0x190] sm:$0xff] %vm497, %v453
    %549 = vst.msk [vmem:[%s2 + $0x198] sm:$0xff] %vm497, %v456
    %550 = vst.msk [vmem:[%s2 + $0x1a0] sm:$0xff] %vm497, %v459
    %551 = vst.msk [vmem:[%s2 + $0x1a8] sm:$0xff] %vm497, %v462
    %552 = vst.msk [vmem:[%s2 + $0x1b0] sm:$0xff] %vm497, %v465
    %553 = vst.msk [vmem:[%s2 + $0x1b8] sm:$0xff] %vm497, %v468
    %554 = vst.msk [vmem:[%s2 + $0x1c0] sm:$0xff] %vm497, %v471
    %555 = vst.msk [vmem:[%s2 + $0x1c8] sm:$0xff] %vm497, %v474
    %556 = vst.msk [vmem:[%s2 + $0x1d0] sm:$0xff] %vm497, %v477
    %557 = vst.msk [vmem:[%s2 + $0x1d8] sm:$0xff] %vm497, %v480
    %558 = vst.msk [vmem:[%s2 + $0x1e0] sm:$0xff] %vm497, %v483
    %559 = vst.msk [vmem:[%s2 + $0x1e8] sm:$0xff] %vm497, %v486
    %560 = vst.msk [vmem:[%s2 + $0x1f0] sm:$0xff] %vm497, %v489
    %561 = vst.msk [vmem:[%s2 + $0x1f8] sm:$0xff] %vm497, %v492
    %562 = vst.msk [vmem:[%s2 + $0x200] sm:$0xff] %vm497, %v495
    %v563 = vsel %vm497, %v303, 0.0
    %v564 = vsel %vm497, %v306, 0.0
    %v565 = vadd.f32 %v563, %v564
    %v566 = vsel %vm497, %v309, 0.0
    %v567 = vadd.f32 %v565, %v566
    %v568 = vsel %vm497, %v312, 0.0
    %v569 = vadd.f32 %v567, %v568
    %v570 = vsel %vm497, %v315, 0.0
    %v571 = vadd.f32 %v569, %v570
    %v572 = vsel %vm497, %v318, 0.0
    %v573 = vadd.f32 %v571, %v572
    %v574 = vsel %vm497, %v321, 0.0
    %v575 = vadd.f32 %v573, %v574
    %v576 = vsel %vm497, %v324, 0.0
    %v577 = vadd.f32 %v575, %v576
    %v578 = vsel %vm497, %v327, 0.0
    %v579 = vadd.f32 %v577, %v578
    %v580 = vsel %vm497, %v330, 0.0
    %v581 = vadd.f32 %v579, %v580
    %v582 = vsel %vm497, %v333, 0.0
    %v583 = vadd.f32 %v581, %v582
    %v584 = vsel %vm497, %v336, 0.0
    %v585 = vadd.f32 %v583, %v584
    %v586 = vsel %vm497, %v339, 0.0
    %v587 = vadd.f32 %v585, %v586
    %v588 = vsel %vm497, %v342, 0.0
    %v589 = vadd.f32 %v587, %v588
    %v590 = vsel %vm497, %v345, 0.0
    %v591 = vadd.f32 %v589, %v590
    %v592 = vsel %vm497, %v348, 0.0
    %v593 = vadd.f32 %v591, %v592
    %v594 = vsel %vm497, %v351, 0.0
    %v595 = vadd.f32 %v593, %v594
    %v596 = vsel %vm497, %v354, 0.0
    %v597 = vadd.f32 %v595, %v596
    %v598 = vsel %vm497, %v357, 0.0
    %v599 = vadd.f32 %v597, %v598
    %v600 = vsel %vm497, %v360, 0.0
    %v601 = vadd.f32 %v599, %v600
    %v602 = vsel %vm497, %v363, 0.0
    %v603 = vadd.f32 %v601, %v602
    %v604 = vsel %vm497, %v366, 0.0
    %v605 = vadd.f32 %v603, %v604
    %v606 = vsel %vm497, %v369, 0.0
    %v607 = vadd.f32 %v605, %v606
    %v608 = vsel %vm497, %v372, 0.0
    %v609 = vadd.f32 %v607, %v608
    %v610 = vsel %vm497, %v375, 0.0
    %v611 = vadd.f32 %v609, %v610
    %v612 = vsel %vm497, %v378, 0.0
    %v613 = vadd.f32 %v611, %v612
    %v614 = vsel %vm497, %v381, 0.0
    %v615 = vadd.f32 %v613, %v614
    %v616 = vsel %vm497, %v384, 0.0
    %v617 = vadd.f32 %v615, %v616
    %v618 = vsel %vm497, %v387, 0.0
    %v619 = vadd.f32 %v617, %v618
    %v620 = vsel %vm497, %v390, 0.0
    %v621 = vadd.f32 %v619, %v620
    %v622 = vsel %vm497, %v393, 0.0
    %v623 = vadd.f32 %v621, %v622
    %v624 = vsel %vm497, %v396, 0.0
    %v625 = vadd.f32 %v623, %v624
    %v626 = vsel %vm497, %v399, 0.0
    %v627 = vadd.f32 %v625, %v626
    %v628 = vsel %vm497, %v402, 0.0
    %v629 = vadd.f32 %v627, %v628
    %v630 = vsel %vm497, %v405, 0.0
    %v631 = vadd.f32 %v629, %v630
    %v632 = vsel %vm497, %v408, 0.0
    %v633 = vadd.f32 %v631, %v632
    %v634 = vsel %vm497, %v411, 0.0
    %v635 = vadd.f32 %v633, %v634
    %v636 = vsel %vm497, %v414, 0.0
    %v637 = vadd.f32 %v635, %v636
    %v638 = vsel %vm497, %v417, 0.0
    %v639 = vadd.f32 %v637, %v638
    %v640 = vsel %vm497, %v420, 0.0
    %v641 = vadd.f32 %v639, %v640
    %v642 = vsel %vm497, %v423, 0.0
    %v643 = vadd.f32 %v641, %v642
    %v644 = vsel %vm497, %v426, 0.0
    %v645 = vadd.f32 %v643, %v644
    %v646 = vsel %vm497, %v429, 0.0
    %v647 = vadd.f32 %v645, %v646
    %v648 = vsel %vm497, %v432, 0.0
    %v649 = vadd.f32 %v647, %v648
    %v650 = vsel %vm497, %v435, 0.0
    %v651 = vadd.f32 %v649, %v650
    %v652 = vsel %vm497, %v438, 0.0
    %v653 = vadd.f32 %v651, %v652
    %v654 = vsel %vm497, %v441, 0.0
    %v655 = vadd.f32 %v653, %v654
    %v656 = vsel %vm497, %v444, 0.0
    %v657 = vadd.f32 %v655, %v656
    %v658 = vsel %vm497, %v447, 0.0
    %v659 = vadd.f32 %v657, %v658
    %v660 = vsel %vm497, %v450, 0.0
    %v661 = vadd.f32 %v659, %v660
    %v662 = vsel %vm497, %v453, 0.0
    %v663 = vadd.f32 %v661, %v662
    %v664 = vsel %vm497, %v456, 0.0
    %v665 = vadd.f32 %v663, %v664
    %v666 = vsel %vm497, %v459, 0.0
    %v667 = vadd.f32 %v665, %v666
    %v668 = vsel %vm497, %v462, 0.0
    %v669 = vadd.f32 %v667, %v668
    %v670 = vsel %vm497, %v465, 0.0
    %v671 = vadd.f32 %v669, %v670
    %v672 = vsel %vm497, %v468, 0.0
    %v673 = vadd.f32 %v671, %v672
    %v674 = vsel %vm497, %v471, 0.0
    %v675 = vadd.f32 %v673, %v674
    %v676 = vsel %vm497, %v474, 0.0
    %v677 = vadd.f32 %v675, %v676
    %v678 = vsel %vm497, %v477, 0.0
    %v679 = vadd.f32 %v677, %v678
    %v680 = vsel %vm497, %v480, 0.0
    %v681 = vadd.f32 %v679, %v680
    %v682 = vsel %vm497, %v483, 0.0
    %v683 = vadd.f32 %v681, %v682
    %v684 = vsel %vm497, %v486, 0.0
    %v685 = vadd.f32 %v683, %v684
    %v686 = vsel %vm497, %v489, 0.0
    %v687 = vadd.f32 %v685, %v686
    %v688 = vsel %vm497, %v492, 0.0
    %v689 = vadd.f32 %v687, %v688
    %v690 = vsel %vm497, %v495, 0.0
    %v691 = vadd.f32 %v689, %v690
    %v692 = vrot.slane %v691, 4
    %v693 = vadd.f32 %v691, %v692
    %v694 = vrot.slane %v693, 2
    %v695 = vadd.f32 %v693, %v694
    %v696 = vrot.slane %v695, 1
    %v697 = vadd.f32 %v695, %v696
    %v698 = vmul.f32 %v303, %v303
    %v699 = vmul.f32 %v306, %v306
    %v700 = vmul.f32 %v309, %v309
    %v701 = vmul.f32 %v312, %v312
    %v702 = vmul.f32 %v315, %v315
    %v703 = vmul.f32 %v318, %v318
    %v704 = vmul.f32 %v321, %v321
    %v705 = vmul.f32 %v324, %v324
    %v706 = vmul.f32 %v327, %v327
    %v707 = vmul.f32 %v330, %v330
    %v708 = vmul.f32 %v333, %v333
    %v709 = vmul.f32 %v336, %v336
    %v710 = vmul.f32 %v339, %v339
    %v711 = vmul.f32 %v342, %v342
    %v712 = vmul.f32 %v345, %v345
    %v713 = vmul.f32 %v348, %v348
    %v714 = vmul.f32 %v351, %v351
    %v715 = vmul.f32 %v354, %v354
    %v716 = vmul.f32 %v357, %v357
    %v717 = vmul.f32 %v360, %v360
    %v718 = vmul.f32 %v363, %v363
    %v719 = vmul.f32 %v366, %v366
    %v720 = vmul.f32 %v369, %v369
    %v721 = vmul.f32 %v372, %v372
    %v722 = vmul.f32 %v375, %v375
    %v723 = vmul.f32 %v378, %v378
    %v724 = vmul.f32 %v381, %v381
    %v725 = vmul.f32 %v384, %v384
    %v726 = vmul.f32 %v387, %v387
    %v727 = vmul.f32 %v390, %v390
    %v728 = vmul.f32 %v393, %v393
    %v729 = vmul.f32 %v396, %v396
    %v730 = vmul.f32 %v399, %v399
    %v731 = vmul.f32 %v402, %v402
    %v732 = vmul.f32 %v405, %v405
    %v733 = vmul.f32 %v408, %v408
    %v734 = vmul.f32 %v411, %v411
    %v735 = vmul.f32 %v414, %v414
    %v736 = vmul.f32 %v417, %v417
    %v737 = vmul.f32 %v420, %v420
    %v738 = vmul.f32 %v423, %v423
    %v739 = vmul.f32 %v426, %v426
    %v740 = vmul.f32 %v429, %v429
    %v741 = vmul.f32 %v432, %v432
    %v742 = vmul.f32 %v435, %v435
    %v743 = vmul.f32 %v438, %v438
    %v744 = vmul.f32 %v441, %v441
    %v745 = vmul.f32 %v444, %v444
    %v746 = vmul.f32 %v447, %v447
    %v747 = vmul.f32 %v450, %v450
    %v748 = vmul.f32 %v453, %v453
    %v749 = vmul.f32 %v456, %v456
    %v750 = vmul.f32 %v459, %v459
    %v751 = vmul.f32 %v462, %v462
    %v752 = vmul.f32 %v465, %v465
    %v753 = vmul.f32 %v468, %v468
    %v754 = vmul.f32 %v471, %v471
    %v755 = vmul.f32 %v474, %v474
    %v756 = vmul.f32 %v477, %v477
    %v757 = vmul.f32 %v480, %v480
    %v758 = vmul.f32 %v483, %v483
    %v759 = vmul.f32 %v486, %v486
    %v760 = vmul.f32 %v489, %v489
    %v761 = vmul.f32 %v492, %v492
    %v762 = vmul.f32 %v495, %v495
    %v763 = vsel %vm497, %v698, 0.0
    %v764 = vsel %vm497, %v699, 0.0
    %v765 = vadd.f32 %v763, %v764
    %v766 = vsel %vm497, %v700, 0.0
    %v767 = vadd.f32 %v765, %v766
    %v768 = vsel %vm497, %v701, 0.0
    %v769 = vadd.f32 %v767, %v768
    %v770 = vsel %vm497, %v702, 0.0
    %v771 = vadd.f32 %v769, %v770
    %v772 = vsel %vm497, %v703, 0.0
    %v773 = vadd.f32 %v771, %v772
    %v774 = vsel %vm497, %v704, 0.0
    %v775 = vadd.f32 %v773, %v774
    %v776 = vsel %vm497, %v705, 0.0
    %v777 = vadd.f32 %v775, %v776
    %v778 = vsel %vm497, %v706, 0.0
    %v779 = vadd.f32 %v777, %v778
    %v780 = vsel %vm497, %v707, 0.0
    %v781 = vadd.f32 %v779, %v780
    %v782 = vsel %vm497, %v708, 0.0
    %v783 = vadd.f32 %v781, %v782
    %v784 = vsel %vm497, %v709, 0.0
    %v785 = vadd.f32 %v783, %v784
    %v786 = vsel %vm497, %v710, 0.0
    %v787 = vadd.f32 %v785, %v786
    %v788 = vsel %vm497, %v711, 0.0
    %v789 = vadd.f32 %v787, %v788
    %v790 = vsel %vm497, %v712, 0.0
    %v791 = vadd.f32 %v789, %v790
    %v792 = vsel %vm497, %v713, 0.0
    %v793 = vadd.f32 %v791, %v792
    %v794 = vsel %vm497, %v714, 0.0
    %v795 = vadd.f32 %v793, %v794
    %v796 = vsel %vm497, %v715, 0.0
    %v797 = vadd.f32 %v795, %v796
    %v798 = vsel %vm497, %v716, 0.0
    %v799 = vadd.f32 %v797, %v798
    %v800 = vsel %vm497, %v717, 0.0
    %v801 = vadd.f32 %v799, %v800
    %v802 = vsel %vm497, %v718, 0.0
    %v803 = vadd.f32 %v801, %v802
    %v804 = vsel %vm497, %v719, 0.0
    %v805 = vadd.f32 %v803, %v804
    %v806 = vsel %vm497, %v720, 0.0
    %v807 = vadd.f32 %v805, %v806
    %v808 = vsel %vm497, %v721, 0.0
    %v809 = vadd.f32 %v807, %v808
    %v810 = vsel %vm497, %v722, 0.0
    %v811 = vadd.f32 %v809, %v810
    %v812 = vsel %vm497, %v723, 0.0
    %v813 = vadd.f32 %v811, %v812
    %v814 = vsel %vm497, %v724, 0.0
    %v815 = vadd.f32 %v813, %v814
    %v816 = vsel %vm497, %v725, 0.0
    %v817 = vadd.f32 %v815, %v816
    %v818 = vsel %vm497, %v726, 0.0
    %v819 = vadd.f32 %v817, %v818
    %v820 = vsel %vm497, %v727, 0.0
    %v821 = vadd.f32 %v819, %v820
    %v822 = vsel %vm497, %v728, 0.0
    %v823 = vadd.f32 %v821, %v822
    %v824 = vsel %vm497, %v729, 0.0
    %v825 = vadd.f32 %v823, %v824
    %v826 = vsel %vm497, %v730, 0.0
    %v827 = vadd.f32 %v825, %v826
    %v828 = vsel %vm497, %v731, 0.0
    %v829 = vadd.f32 %v827, %v828
    %v830 = vsel %vm497, %v732, 0.0
    %v831 = vadd.f32 %v829, %v830
    %v832 = vsel %vm497, %v733, 0.0
    %v833 = vadd.f32 %v831, %v832
    %v834 = vsel %vm497, %v734, 0.0
    %v835 = vadd.f32 %v833, %v834
    %v836 = vsel %vm497, %v735, 0.0
    %v837 = vadd.f32 %v835, %v836
    %v838 = vsel %vm497, %v736, 0.0
    %v839 = vadd.f32 %v837, %v838
    %v840 = vsel %vm497, %v737, 0.0
    %v841 = vadd.f32 %v839, %v840
    %v842 = vsel %vm497, %v738, 0.0
    %v843 = vadd.f32 %v841, %v842
    %v844 = vsel %vm497, %v739, 0.0
    %v845 = vadd.f32 %v843, %v844
    %v846 = vsel %vm497, %v740, 0.0
    %v847 = vadd.f32 %v845, %v846
    %v848 = vsel %vm497, %v741, 0.0
    %v849 = vadd.f32 %v847, %v848
    %v850 = vsel %vm497, %v742, 0.0
    %v851 = vadd.f32 %v849, %v850
    %v852 = vsel %vm497, %v743, 0.0
    %v853 = vadd.f32 %v851, %v852
    %v854 = vsel %vm497, %v744, 0.0
    %v855 = vadd.f32 %v853, %v854
    %v856 = vsel %vm497, %v745, 0.0
    %v857 = vadd.f32 %v855, %v856
    %v858 = vsel %vm497, %v746, 0.0
    %v859 = vadd.f32 %v857, %v858
    %v860 = vsel %vm497, %v747, 0.0
    %v861 = vadd.f32 %v859, %v860
    %v862 = vsel %vm497, %v748, 0.0
    %v863 = vadd.f32 %v861, %v862
    %v864 = vsel %vm497, %v749, 0.0
    %v865 = vadd.f32 %v863, %v864
    %v866 = vsel %vm497, %v750, 0.0
    %v867 = vadd.f32 %v865, %v866
    %v868 = vsel %vm497, %v751, 0.0
    %v869 = vadd.f32 %v867, %v868
    %v870 = vsel %vm497, %v752, 0.0
    %v871 = vadd.f32 %v869, %v870
    %v872 = vsel %vm497, %v753, 0.0
    %v873 = vadd.f32 %v871, %v872
    %v874 = vsel %vm497, %v754, 0.0
    %v875 = vadd.f32 %v873, %v874
    %v876 = vsel %vm497, %v755, 0.0
    %v877 = vadd.f32 %v875, %v876
    %v878 = vsel %vm497, %v756, 0.0
    %v879 = vadd.f32 %v877, %v878
    %v880 = vsel %vm497, %v757, 0.0
    %v881 = vadd.f32 %v879, %v880
    %v882 = vsel %vm497, %v758, 0.0
    %v883 = vadd.f32 %v881, %v882
    %v884 = vsel %vm497, %v759, 0.0
    %v885 = vadd.f32 %v883, %v884
    %v886 = vsel %vm497, %v760, 0.0
    %v887 = vadd.f32 %v885, %v886
    %v888 = vsel %vm497, %v761, 0.0
    %v889 = vadd.f32 %v887, %v888
    %v890 = vsel %vm497, %v762, 0.0
    %v891 = vadd.f32 %v889, %v890
    %v892 = vrot.slane %v891, 4
    %v893 = vadd.f32 %v891, %v892
    %v894 = vrot.slane %v893, 2
    %v895 = vadd.f32 %v893, %v894
    %v896 = vrot.slane %v895, 1
    %v897 = vadd.f32 %v895, %v896
    %vm898 = vcmask 57344
    %899 = vst.msk [vmem:[#allocation2] sm:$0x1] %vm898, %v697
    %900 = vst.msk [vmem:[#allocation4] sm:$0x1] %vm898, %v897
    // Predicated region
    $region10: #{tpu_custom_call.1} parent=1 // pred_check
      _
    $region11: #{tpu_custom_call.1} parent=1 // pred_check_branch
      %902 = sbr.rel (0) target = $region13
    $region12: #{tpu_custom_call.1} parent=1 // pred_region
      _
    $region13: #{tpu_custom_call.1} parent=1 // pred_fallthru
      _
    // Predicated region
    $region14: #{tpu_custom_call.1} parent=1 // pred_check
      _
    $region15: #{tpu_custom_call.1} parent=1 // pred_check_branch
      %904 = sbr.rel (0) target = $region17
    $region16: #{tpu_custom_call.1} parent=1 // pred_region
      %906 = vsyncadd [#allocation3], 0
      %s908 = sshll.u32 [#allocation2], 4
      %s909 = int_to_ptr.vmem [resolvable:$true] %s908
      %s910 = sshll.u32 %s3, 4
      %s911 = int_to_ptr.hbm [resolvable:$true] %s910
      %913 = dma.vmem_to_hbm [thread:$0]  %s909, 16, %s911, [#allocation3]
    $region17: #{tpu_custom_call.1} parent=1 // pred_fallthru
      _
    // Predicated region
    $region18: #{tpu_custom_call.1} parent=1 // pred_check
      _
    $region19: #{tpu_custom_call.1} parent=1 // pred_check_branch
      %915 = sbr.rel (0) target = $region21
    $region20: #{tpu_custom_call.1} parent=1 // pred_region
      %917 = vsyncadd [#allocation5], 0
      %s919 = sshll.u32 [#allocation4], 4
      %s920 = int_to_ptr.vmem [resolvable:$true] %s919
      %s921 = sshll.u32 %s4, 4
      %s922 = int_to_ptr.hbm [resolvable:$true] %s921
      %924 = dma.vmem_to_hbm [thread:$0]  %s920, 16, %s922, [#allocation5]
    $region21: #{tpu_custom_call.1} parent=1 // pred_fallthru
      _
    // Predicated region
    $region22: #{tpu_custom_call.1} parent=1 // pred_check
      _
    $region23: #{tpu_custom_call.1} parent=1 // pred_check_branch
      %926 = sbr.rel (0) target = $region25
    $region24: #{tpu_custom_call.1} parent=1 // pred_region
      _
    $region25: #{tpu_custom_call.1} parent=1 // pred_fallthru
      _
    // Predicated region
    $region26: #{tpu_custom_call.1} parent=1 // pred_check
      _
    $region27: #{tpu_custom_call.1} parent=1 // pred_check_branch
      %928 = sbr.rel (0) target = $region29
    $region28: #{tpu_custom_call.1} parent=1 // pred_region
      %930 = dma.done [#allocation3], 16
    $region29: #{tpu_custom_call.1} parent=1 // pred_fallthru
      _
    // Predicated region
    $region30: #{tpu_custom_call.1} parent=1 // pred_check
      _
    $region31: #{tpu_custom_call.1} parent=1 // pred_check_branch
      %932 = sbr.rel (0) target = $region33
    $region32: #{tpu_custom_call.1} parent=1 // pred_region
      %934 = dma.done [#allocation5], 16
    $region33: #{tpu_custom_call.1} parent=1 // pred_fallthru
      _
    %935 = vsyncpa [#allocation3], 1
    %936 = vsyncpa [#allocation5], 1

</llo_original>
